<compile_context>
chip_gen: v6e
topology: v6e:2x2x1
jax: 0.10.0
libtpu: 0.0.40
codegen_flags: <defaults>
</compile_context>

<pallas_src>
import functools

import jax
import jax.numpy as jnp
from jax.experimental import pallas as pl
from jax.experimental.pallas import tpu as pltpu


_INPUT_VMEM_BUDGET = 44 * 1024 * 1024   # double-buffered inputs; safe under v7x's 64 MiB
_VMEM_LIMIT_SOFT_CAP = 56 * 1024 * 1024
_MAX_TILE_D = 2048                      # lanes per grid step before D-blocking kicks in


def _round_up(x: int, m: int) -> int:
    return ((x + m - 1) // m) * m


def _choose_tile_d(D: int) -> int:
    """Pick a D tile that divides D exactly (multiple of 128 when blocked)."""
    if D <= _MAX_TILE_D:
        return D
    for cand in range(_MAX_TILE_D, 127, -128):
        if D % cand == 0:
            return cand
    return D  # no clean multiple-of-128 divisor: keep full rows


def _choose_tile_b(B: int, tile_d: int, itemsize: int) -> int:
    """Largest batch tile fitting the double-buffered input VMEM budget."""
    lanes = _round_up(tile_d, 128)               # VMEM pads the minor dim to 128 lanes
    per_row_bytes = 2 * 2 * lanes * itemsize     # 2 inputs x 2 pipeline buffers
    fit = max(8, _INPUT_VMEM_BUDGET // per_row_bytes)
    if fit >= B:
        if B < 16:
            return B                              # tiny batch: one exact block
        # Whole batch fits in one tile; split into two grid steps anyway so both
        # v7x TensorCores get work (harmless on single-TC v5e/v6e).
        return _round_up(pl.cdiv(B, 2), 8)
    return max(8, (fit // 8) * 8)


def _hrm_similarity_kernel(x_ref, y_ref, o_ref, *, tau: float):
    d = pl.program_id(1)

    @pl.when(d == 0)
    def _init():
        o_ref[...] = jnp.zeros_like(o_ref)

    # Hot path: elementwise product (VPU), lane reduction (XLU) — f32 accumulate.
    x = x_ref[...].astype(jnp.float32)
    y = y_ref[...].astype(jnp.float32)
    o_ref[...] += jnp.sum(x * y, axis=1, keepdims=True)

    @pl.when(d == pl.num_programs(1) - 1)
    def _finalize():
        o_ref[...] = jax.nn.sigmoid(o_ref[...] / tau)   # true division: matches torch


def hrm_similarity(x: jax.Array, y: jax.Array, *, tau: float = 1.0) -> jax.Array:
    """Pallas implementation of HRMSimilarityModule.forward.

    Args:
      x, y: (B, D) floating-point arrays (f32 or bf16/f16; upcast in-kernel).
      tau:  temperature.
    Returns:
      (B, 1) float32 array of sigmoid(sum(x*y, axis=1) / tau).
    """
    assert x.shape == y.shape and x.ndim == 2
    assert x.dtype == y.dtype
    assert jnp.issubdtype(x.dtype, jnp.floating)
    B, D = x.shape

    tile_d = _choose_tile_d(D)
    assert D % tile_d == 0  # guarantees no garbage lanes in the reduction
    nd = D // tile_d
    tile_b = _choose_tile_b(B, tile_d, x.dtype.itemsize)
    nb = pl.cdiv(B, tile_b)

    # Explicit scoped-VMEM limit so the compiler allows the large tiles.
    lanes = _round_up(tile_d, 128)
    in_bytes = 2 * 2 * tile_b * lanes * x.dtype.itemsize     # 2 inputs, double-buffered
    out_bytes = 2 * tile_b * 128 * 4                         # (tile_b, 1) padded, x2 bufs
    need = in_bytes + out_bytes
    vmem_limit = max(32 * 1024 * 1024, min(_VMEM_LIMIT_SOFT_CAP, need + (8 << 20)))
    vmem_limit = max(vmem_limit, need + (2 << 20))           # never below what we need

    kernel = functools.partial(_hrm_similarity_kernel, tau=float(tau))

    return pl.pallas_call(
        kernel,
        out_shape=jax.ShapeDtypeStruct((B, 1), jnp.float32),
        grid_spec=pltpu.PrefetchScalarGridSpec(
            num_scalar_prefetch=0,
            grid=(nb, nd),                                   # reduction axis last
            in_specs=[
                pl.BlockSpec((tile_b, tile_d), lambda i, k: (i, k)),
                pl.BlockSpec((tile_b, tile_d), lambda i, k: (i, k)),
            ],
            out_specs=pl.BlockSpec((tile_b, 1), lambda i, k: (i, 0)),
        ),
        compiler_params=pltpu.CompilerParams(
            dimension_semantics=("parallel", "arbitrary"),
            vmem_limit_bytes=int(vmem_limit),
        ),
    )(x, y)


if __name__ == "__main__":
    def ref_fn(x, y, tau):
        xf = x.astype(jnp.float32)
        yf = y.astype(jnp.float32)
        return jax.nn.sigmoid(jnp.sum(xf * yf, axis=1, keepdims=True) / tau)

    # 1) Small shapes matching the module's toy regime (batch=8, hidden=32), f32.
    kx, ky = jax.random.split(jax.random.PRNGKey(0))
    x = jax.random.normal(kx, (8, 32), dtype=jnp.float32)
    y = jax.random.normal(ky, (8, 32), dtype=jnp.float32)
    out = jax.block_until_ready(hrm_similarity(x, y, tau=1.0))
    assert out.shape == (8, 1), out.shape
    assert jnp.allclose(out, ref_fn(x, y, 1.0), atol=1e-6, rtol=1e-6)

    # 2) Ragged batch + 2-step batch grid (exercises cdiv tail + megacore split).
    kx, ky = jax.random.split(jax.random.PRNGKey(1))
    x = jax.random.normal(kx, (300, 384), dtype=jnp.float32)
    y = jax.random.normal(ky, (300, 384), dtype=jnp.float32)
    out = jax.block_until_ready(hrm_similarity(x, y, tau=2.0))
    assert out.shape == (300, 1), out.shape
    assert jnp.allclose(out, ref_fn(x, y, 2.0), atol=1e-4, rtol=1e-4)

    # 3) Large feature dim -> D-blocked accumulation path (nd > 1).
    kx, ky = jax.random.split(jax.random.PRNGKey(2))
    x = jax.random.normal(kx, (64, 2560), dtype=jnp.float32)
    y = jax.random.normal(ky, (64, 2560), dtype=jnp.float32)
    out = jax.block_until_ready(hrm_similarity(x, y, tau=1.0))
    assert out.shape == (64, 1), out.shape
    assert jnp.allclose(out, ref_fn(x, y, 1.0), atol=1e-4, rtol=1e-4)

    # 4) bf16 inputs (halved HBM traffic), f32 accumulation in-kernel.
    x16 = x.astype(jnp.bfloat16)
    y16 = y.astype(jnp.bfloat16)
    out = jax.block_until_ready(hrm_similarity(x16, y16, tau=1.0))
    assert out.shape == (64, 1), out.shape
    assert jnp.allclose(out, ref_fn(x16, y16, 1.0), atol=1e-3, rtol=1e-3)

    print("KERNEL_OK")
</pallas_src>

<mosaic_0001>
module attributes {stable_mosaic.version = 11 : i64} {
  func.func @_hrm_similarity_kernel(%arg0: i32, %arg1: i32, %arg2: memref<8x32xf32, #tpu.memory_space<vmem>>, %arg3: memref<8x32xf32, #tpu.memory_space<vmem>>, %arg4: memref<8x1xf32, #tpu.memory_space<vmem>>) attributes {dimension_semantics = [#tpu.dimension_semantics<parallel>, #tpu.dimension_semantics<arbitrary>], iteration_bounds = array<i64: 1, 1>, scalar_prefetch = 0 : i64, scratch_operands = 0 : i64, tpu.core_type = #tpu.core_type<tc>, window_params = [{transform_indices = @transform_0, window_bounds = array<i64: 8, 32>}, {transform_indices = @transform_1, window_bounds = array<i64: 8, 32>}, {transform_indices = @transform_2, window_bounds = array<i64: 8, 1>}]} {
    %c0_i32 = arith.constant 0 : i32
    %0 = arith.cmpi eq, %arg1, %c0_i32 : i32
    %1 = arith.extui %0 : i1 to i32
    %c0_i32_0 = arith.constant 0 : i32
    %2 = arith.cmpi ne, %1, %c0_i32_0 : i32
    scf.if %2 {
      %cst_10 = arith.constant 0.000000e+00 : f32
      %14 = vector.broadcast %cst_10 : f32 to vector<8x1xf32>
      %c0_11 = arith.constant 0 : index
      %c0_12 = arith.constant 0 : index
      %15 = vector.load %arg4[%c0_11, %c0_12] : memref<8x1xf32, #tpu.memory_space<vmem>>, vector<8x1xf32>
      tpu.vector_store %arg4[%c0_11, %c0_12], %14 {strides = array<i32>} : memref<8x1xf32, #tpu.memory_space<vmem>>, vector<8x1xf32>,
    } else {
    }
    %c0 = arith.constant 0 : index
    %c0_1 = arith.constant 0 : index
    %3 = vector.load %arg2[%c0, %c0_1] : memref<8x32xf32, #tpu.memory_space<vmem>>, vector<8x32xf32>
    %c0_2 = arith.constant 0 : index
    %c0_3 = arith.constant 0 : index
    %4 = vector.load %arg3[%c0_2, %c0_3] : memref<8x32xf32, #tpu.memory_space<vmem>>, vector<8x32xf32>
    %c0_4 = arith.constant 0 : index
    %c0_5 = arith.constant 0 : index
    %5 = vector.load %arg4[%c0_4, %c0_5] : memref<8x1xf32, #tpu.memory_space<vmem>>, vector<8x1xf32>
    %6 = arith.mulf %3, %4 : vector<8x32xf32>
    %cst = arith.constant dense<0.000000e+00> : vector<8xf32>
    %7 = vector.multi_reduction <add>, %6, %cst [1] : vector<8x32xf32> to vector<8xf32>
    %8 = vector.shape_cast %7 : vector<8xf32> to vector<8x1xf32>
    %9 = arith.addf %5, %8 : vector<8x1xf32>
    %c0_6 = arith.constant 0 : index
    %c0_7 = arith.constant 0 : index
    %10 = vector.load %arg4[%c0_6, %c0_7] : memref<8x1xf32, #tpu.memory_space<vmem>>, vector<8x1xf32>
    tpu.vector_store %arg4[%c0_6, %c0_7], %9 {strides = array<i32>} : memref<8x1xf32, #tpu.memory_space<vmem>>, vector<8x1xf32>,
    %c0_i32_8 = arith.constant 0 : i32
    %11 = arith.cmpi eq, %arg1, %c0_i32_8 : i32
    %12 = arith.extui %11 : i1 to i32
    %c0_i32_9 = arith.constant 0 : i32
    %13 = arith.cmpi ne, %12, %c0_i32_9 : i32
    scf.if %13 {
      %c0_10 = arith.constant 0 : index
      %c0_11 = arith.constant 0 : index
      %14 = vector.load %arg4[%c0_10, %c0_11] : memref<8x1xf32, #tpu.memory_space<vmem>>, vector<8x1xf32>
      %cst_12 = arith.constant 1.000000e+00 : f32
      %15 = vector.broadcast %cst_12 : f32 to vector<8x1xf32>
      %16 = arith.divf %14, %15 : vector<8x1xf32>
      %17 = arith.negf %16 : vector<8x1xf32>
      %18 = math.exp %17 : vector<8x1xf32>
      %cst_13 = arith.constant 1.000000e+00 : f32
      %19 = vector.broadcast %cst_13 : f32 to vector<8x1xf32>
      %20 = arith.addf %19, %18 : vector<8x1xf32>
      %21 = arith.divf %19, %20 : vector<8x1xf32>
      %c0_14 = arith.constant 0 : index
      %c0_15 = arith.constant 0 : index
      %22 = vector.load %arg4[%c0_14, %c0_15] : memref<8x1xf32, #tpu.memory_space<vmem>>, vector<8x1xf32>
      tpu.vector_store %arg4[%c0_14, %c0_15], %21 {strides = array<i32>} : memref<8x1xf32, #tpu.memory_space<vmem>>, vector<8x1xf32>,
    } else {
    }
    return
  }
  func.func @transform_0(%arg0: i32, %arg1: i32) -> (i32, i32) {
    %c0_i32 = arith.constant 0 : i32
    return %arg0, %arg1 : i32, i32
  }
  func.func @transform_1(%arg0: i32, %arg1: i32) -> (i32, i32) {
    %c0_i32 = arith.constant 0 : i32
    return %arg0, %arg1 : i32, i32
  }
  func.func @transform_2(%arg0: i32, %arg1: i32) -> (i32, i32) {
    %c0_i32 = arith.constant 0 : i32
    %c0_i32_0 = arith.constant 0 : i32
    return %arg0, %c0_i32 : i32, i32
  }
}

</mosaic_0001>

<llo_original>
// kernel: tpu_custom_call.1
$region0: #{tpu_custom_call.1}
  #allocation0 [shape = 'u32[]', space=smem, size = 0x4, offset = 0x4, fixed_abs, tag = 'smem constant byte address 0x4 - core index']
  #allocation1 [shape = 'u32[144,128]{1,0:T(1,128)}', space=vmem, size = 0x12000, scoped, tag = 'internal scratch']
  %s0 = inlined_call_operand.hbm [shape: f32[8,32], index: 0, kind: input, shape index: {}]
  %s1 = inlined_call_operand.hbm [shape: f32[8,32], index: 1, kind: input, shape index: {}]
  %s2 = inlined_call_operand.vmem [shape: f32[8,1], index: 2, kind: output, shape index: {}]
  %s3 = sld [smem:[#allocation0]]
  $region34: #{tpu_custom_call.1} parent=0
    _
  %s5 = ssub.s32 1, %s3
  %s6 = scalar_select 0, %s5, %s3
  $region1: #{tpu_custom_call.1} parent=0
    #allocation2 [shape = 'u8[4096]{0}', space=vmem, size = 0x1000, scoped, tag = 'input window, operand 0, single buffered']
    #allocation3 [shape = 's32[1]{0}', space=sflag, size = 0x4, scoped, tag = 'scoped memory for tpu_custom_call.1']
    #allocation4 [shape = 'u8[4096]{0}', space=vmem, size = 0x1000, scoped, tag = 'input window, operand 1, single buffered']
    #allocation5 [shape = 's32[1]{0}', space=sflag, size = 0x4, scoped, tag = 'scoped memory for tpu_custom_call.1']
    %7 = vsyncpa [#allocation3], 0
    %8 = vsyncpa [#allocation5], 0
    // Predicated region
    $region2: #{tpu_custom_call.1} parent=1 // pred_check
      _
    $region3: #{tpu_custom_call.1} parent=1 // pred_check_branch
      %10 = sbr.rel (0) target = $region5
    $region4: #{tpu_custom_call.1} parent=1 // pred_region
      %s12 = ssub.s32 128, 128
      %13 = vsyncadd [#allocation3], %s12
      %s15 = sshll.u32 [#allocation2], 4
      %s16 = int_to_ptr.vmem [resolvable:$true] %s15
      %18 = dma.hbm_to_vmem [thread:$0]  %s0, 128, %s16, [#allocation3]
    $region5: #{tpu_custom_call.1} parent=1 // pred_fallthru
      _
    // Predicated region
    $region6: #{tpu_custom_call.1} parent=1 // pred_check
      _
    $region7: #{tpu_custom_call.1} parent=1 // pred_check_branch
      %20 = sbr.rel (0) target = $region9
    $region8: #{tpu_custom_call.1} parent=1 // pred_region
      %s22 = ssub.s32 128, 128
      %23 = vsyncadd [#allocation5], %s22
      %s25 = sshll.u32 [#allocation4], 4
      %s26 = int_to_ptr.vmem [resolvable:$true] %s25
      %28 = dma.hbm_to_vmem [thread:$0]  %s1, 128, %s26, [#allocation5]
    $region9: #{tpu_custom_call.1} parent=1 // pred_fallthru
      _
    // Predicated region
    $region10: #{tpu_custom_call.1} parent=1 // pred_check
      _
    $region11: #{tpu_custom_call.1} parent=1 // pred_check_branch
      %30 = sbr.rel (0) target = $region13
    $region12: #{tpu_custom_call.1} parent=1 // pred_region
      %31 = dma.done [#allocation3], 128
    $region13: #{tpu_custom_call.1} parent=1 // pred_fallthru
      _
    // Predicated region
    $region14: #{tpu_custom_call.1} parent=1 // pred_check
      _
    $region15: #{tpu_custom_call.1} parent=1 // pred_check_branch
      %33 = sbr.rel (0) target = $region17
    $region16: #{tpu_custom_call.1} parent=1 // pred_region
      %34 = dma.done [#allocation5], 128
    $region17: #{tpu_custom_call.1} parent=1 // pred_fallthru
      _
    %p35 = scmp.eq.s32.totalorder 0, 0
    // Predicated region
    $region18: #{tpu_custom_call.1} parent=1 // pred_check
      %p36 = pneg %p35
    $region19: #{tpu_custom_call.1} parent=1 // pred_check_branch
      %38 = sbr.rel (%p36) target = $region21
    $region20: #{tpu_custom_call.1} parent=1 // pred_region
      %vm39 = vcmask 7168
      %40 = vst.msk [vmem:[%s2] sm:$0xff] %vm39, 0.0
    $region21: #{tpu_custom_call.1} parent=1 // pred_fallthru
      _
    %v41 = vld [vmem:[#allocation2] sm:$0xff]
    %v42 = vld [vmem:[#allocation4] sm:$0xff]
    %v43 = vld [vmem:[%s2] sm:$0xff]
    %v44 = vmul.f32 %v41, %v42
    %vm45 = vcmask 261120
    %v46 = vsel %vm45, %v44, 0.0
    %47 = vadd.xlane.f32.xlu0 %v46
    %v48 = vpop.xlane.xlu0 %47
    %v49 = vadd.f32 %v43, %v48
    %vm50 = vcmask 7168
    %51 = vst.msk [vmem:[%s2] sm:$0xff] %vm50, %v49
    // Predicated region
    $region22: #{tpu_custom_call.1} parent=1 // pred_check
      %p52 = pneg %p35
    $region23: #{tpu_custom_call.1} parent=1 // pred_check_branch
      %54 = sbr.rel (%p52) target = $region25
    $region24: #{tpu_custom_call.1} parent=1 // pred_region
      %v55 = vld [vmem:[%s2] sm:$0xff]
      %v56 = vxor.u32 %v55, 2147483648
      %v57 = vmul.f32 %v56, 1.442695
      %v58 = vpow.pop %v57
      %v59 = vadd.f32 %v58, 1.0
      %v60 = vrcp.pop %v59
      %v61 = vmul.f32 1.0, %v60
      %62 = vst.msk [vmem:[%s2] sm:$0xff] %vm50, %v61
    $region25: #{tpu_custom_call.1} parent=1 // pred_fallthru
      _
    // Predicated region
    $region26: #{tpu_custom_call.1} parent=1 // pred_check
      _
    $region27: #{tpu_custom_call.1} parent=1 // pred_check_branch
      %64 = sbr.rel (0) target = $region29
    $region28: #{tpu_custom_call.1} parent=1 // pred_region
      _
    $region29: #{tpu_custom_call.1} parent=1 // pred_fallthru
      _
    // Predicated region
    $region30: #{tpu_custom_call.1} parent=1 // pred_check
      _
    $region31: #{tpu_custom_call.1} parent=1 // pred_check_branch
      %66 = sbr.rel (0) target = $region33
    $region32: #{tpu_custom_call.1} parent=1 // pred_region
      _
    $region33: #{tpu_custom_call.1} parent=1 // pred_fallthru
      _
    %67 = vsyncpa [#allocation3], 1
    %68 = vsyncpa [#allocation5], 1

</llo_original>
